<compile_context>
chip_gen: v5e
topology: v5e:2x2
jax: 0.10.0
libtpu: 0.0.40
codegen_flags: <defaults>
</compile_context>

<pallas_src>
import jax
import jax.numpy as jnp
import numpy as np
from jax.experimental import pallas as pl
from jax.experimental.pallas import tpu as pltpu


def _round_up(n: int, m: int) -> int:
    return ((n + m - 1) // m) * m


def _vmem_capacity_bytes(default: int = 64 << 20) -> int:
    """Physical VMEM per core; falls back to the most conservative value (v7x)."""
    try:
        return int(pltpu.get_tpu_info().vmem_capacity_bytes)
    except Exception:
        return default


def plan_h_tile(T: int, D: int, H: int, *, out_dtype_bytes: int = 4,
                tt_max: int = 256, th_max: int = 1024,
                vmem_fraction: float = 0.6) -> tuple[int, int]:
    """Pick the hidden-dim tile TH from a per-generation VMEM budget.

    Budget accounts for double-buffered bf16 weight/x/out tiles, the f32
    accumulator scratch and the f32 xw/gated intermediates (+20% headroom).
    Returns (TH, Dp).
    """
    Dp = _round_up(D, 128)
    TT = min(tt_max, _round_up(T, 16))
    budget = vmem_fraction * _vmem_capacity_bytes()

    fixed = (8 + 2 * out_dtype_bytes) * TT * Dp      # x (2x bf16) + out (2x) + f32 acc
    per_th = 12 * Dp + 12 * TT                        # 2x (w13 + w2) bf16 + f32 intermediates
    avail = budget / 1.2 - fixed
    th = int(avail // per_th)
    th = max(128, (th // 128) * 128)
    th = min(th, th_max, _round_up(H, 128))
    return th, Dp


def prepare_grouped_experts_weights(w1, w2, w3, *, h_tile: int, d_pad: int | None = None,
                                    compute_dtype=jnp.bfloat16):
    """Init-time weight prep: pad, cast to bf16, fuse w1/w3, pre-block per H-tile.

    Returns:
      w13_blocks: (E, nH, Dp, 2*TH)  -- [w1_tile | w3_tile] per H-tile, contiguous
      w2_blocks:  (E, nH, TH, Dp)
    Do this once at init (not per forward call).
    """
    E, D, H = w1.shape
    assert w3.shape == (E, D, H) and w2.shape == (E, H, D)
    Dp = d_pad if d_pad is not None else _round_up(D, 128)
    Hp = _round_up(H, h_tile)
    nH = Hp // h_tile

    w1p = jnp.pad(w1, ((0, 0), (0, Dp - D), (0, Hp - H))).astype(compute_dtype)
    w3p = jnp.pad(w3, ((0, 0), (0, Dp - D), (0, Hp - H))).astype(compute_dtype)
    w2p = jnp.pad(w2, ((0, 0), (0, Hp - H), (0, Dp - D))).astype(compute_dtype)

    w1b = w1p.reshape(E, Dp, nH, h_tile).transpose(0, 2, 1, 3)   # (E, nH, Dp, TH)
    w3b = w3p.reshape(E, Dp, nH, h_tile).transpose(0, 2, 1, 3)   # (E, nH, Dp, TH)
    w13_blocks = jnp.concatenate([w1b, w3b], axis=-1)            # (E, nH, Dp, 2*TH)
    w2_blocks = w2p.reshape(E, nH, h_tile, Dp)                   # (E, nH, TH, Dp)
    return w13_blocks, w2_blocks


def _grouped_experts_kernel(x_ref, w13_ref, w2_ref, o_ref, acc_ref):
    # Grid: (expert e [parallel], token-tile t [parallel], hidden-tile h [arbitrary]).
    h_idx = pl.program_id(2)

    @pl.when(h_idx == 0)
    def _init():
        acc_ref[...] = jnp.zeros_like(acc_ref)

    th = w2_ref.shape[0]
    # One fused MXU matmul for the w1/w3 up-projection; f32 accumulation.
    xw = jnp.dot(x_ref[...], w13_ref[...],
                 preferred_element_type=jnp.float32)              # (TT, 2*TH) f32
    xw1 = xw[:, :th]
    xw3 = xw[:, th:]
    # silu / gating in f32 (EUP sigmoid + VPU mults), portable to v5e.
    gated = (xw1 * jax.nn.sigmoid(xw1)) * xw3                     # (TT, TH) f32
    acc_ref[...] += jnp.dot(gated.astype(w2_ref.dtype), w2_ref[...],
                            preferred_element_type=jnp.float32)   # (TT, Dp) f32

    @pl.when(h_idx == pl.num_programs(2) - 1)
    def _finalize():
        o_ref[...] = acc_ref[...].astype(o_ref.dtype)


def grouped_experts_forward(x, w13_blocks, w2_blocks, *,
                            compute_dtype=jnp.bfloat16, tt_max: int = 256):
    """x: (E, T, D); pre-blocked weights from prepare_grouped_experts_weights."""
    E, T, D = x.shape
    E_w, nH, Dp, two_th = w13_blocks.shape
    TH = two_th // 2
    assert E_w == E and w2_blocks.shape == (E, nH, TH, Dp) and D <= Dp

    # Token tiling: TT >= effective T (rounded to 16 sublanes), capped at tt_max.
    TT = min(tt_max, _round_up(T, 16))
    Tp = _round_up(T, TT)
    nT = Tp // TT

    # Only x is padded / cast per call; weights were prepared at init.
    xp = jnp.pad(x, ((0, 0), (0, Tp - T), (0, Dp - D))).astype(compute_dtype)

    out_bytes = jnp.dtype(x.dtype).itemsize
    tile_vmem = int(1.2 * (
        12 * Dp * TH                  # double-buffered w13 + w2 tiles (bf16)
        + 4 * TT * Dp                 # double-buffered x tile (bf16)
        + 2 * TT * Dp * out_bytes     # double-buffered output tile
        + 4 * TT * Dp                 # f32 accumulator scratch
        + 12 * TT * TH))              # f32 xw / gated intermediates
    vmem_cap = _vmem_capacity_bytes()
    vmem_limit = int(min(max(tile_vmem, 32 << 20), int(0.9 * vmem_cap)))

    cost = pl.CostEstimate(
        flops=6 * E * Tp * Dp * nH * TH,
        transcendentals=E * Tp * nH * TH,
        bytes_accessed=int(xp.size * xp.dtype.itemsize
                           + w13_blocks.size * w13_blocks.dtype.itemsize
                           + w2_blocks.size * w2_blocks.dtype.itemsize
                           + E * Tp * Dp * out_bytes),
    )

    in_specs = [
        pl.BlockSpec((None, TT, Dp), lambda e, t, h: (e, t, 0)),              # x tile
        pl.BlockSpec((None, None, Dp, two_th), lambda e, t, h: (e, h, 0, 0)),  # w1||w3 tile
        pl.BlockSpec((None, None, TH, Dp), lambda e, t, h: (e, h, 0, 0)),      # w2 tile
    ]
    out_specs = pl.BlockSpec((None, TT, Dp), lambda e, t, h: (e, t, 0))

    out = pl.pallas_call(
        _grouped_experts_kernel,
        out_shape=jax.ShapeDtypeStruct((E, Tp, Dp), x.dtype),
        grid_spec=pltpu.PrefetchScalarGridSpec(
            num_scalar_prefetch=0,
            grid=(E, nT, nH),
            in_specs=in_specs,
            out_specs=out_specs,
            scratch_shapes=[pltpu.VMEM((TT, Dp), jnp.float32)],
        ),
        compiler_params=pltpu.CompilerParams(
            dimension_semantics=("parallel", "parallel", "arbitrary"),
            vmem_limit_bytes=vmem_limit,
        ),
        cost_estimate=cost,
    )(xp, w13_blocks, w2_blocks)

    return out[:, :T, :D]


def _reference(x, w1, w2, w3):
    xw1 = jnp.einsum("etd,edh->eth", x, w1)
    xw3 = jnp.einsum("etd,edh->eth", x, w3)
    h = jax.nn.silu(xw1) * xw3
    return jnp.einsum("eth,ehd->etd", h, w2)


if __name__ == "__main__":
    # Small shapes consistent with the module: num_experts=4, dim=32,
    # hidden_dim=200, tokens_per_expert=8.  th_max=128 forces Hp=256 -> nH=2,
    # exercising padding, the H-reduction grid axis, and pl.when init/finalize.
    E, T, D, H = 4, 8, 32, 200

    key = jax.random.PRNGKey(0)
    k_x, k_w1, k_w2, k_w3 = jax.random.split(key, 4)

    w1 = 0.02 * jax.random.truncated_normal(k_w1, -2.0, 2.0, (E, D, H), jnp.float32)
    w2 = 0.02 * jax.random.truncated_normal(k_w2, -2.0, 2.0, (E, H, D), jnp.float32)
    w3 = 0.02 * jax.random.truncated_normal(k_w3, -2.0, 2.0, (E, D, H), jnp.float32)
    x = jax.random.normal(k_x, (E, T, D), jnp.float32)

    # Init-time weight prep (pad + bf16 cast + w1/w3 fusion + per-tile blocking).
    th, Dp = plan_h_tile(T, D, H, th_max=128)
    w13_blocks, w2_blocks = prepare_grouped_experts_weights(w1, w2, w3, h_tile=th, d_pad=Dp)

    out = grouped_experts_forward(x, w13_blocks, w2_blocks)
    out = jax.block_until_ready(out)

    ref = jax.block_until_ready(_reference(x, w1, w2, w3))
    # bf16 matmuls with f32 accumulation vs f32 reference.
    np.testing.assert_allclose(np.asarray(out), np.asarray(ref), rtol=2e-2, atol=2e-4)

    # TODO(synk): the ragged `num_tokens_per_expert` / grouped_mm path needs
    # scalar-prefetch group offsets (PrefetchScalarGridSpec num_scalar_prefetch>0)
    # for data-dependent token tiling; not implemented here.
    print("KERNEL_OK")
</pallas_src>

<mosaic_0001>
module attributes {stable_mosaic.version = 11 : i64} {
  func.func @_grouped_experts_kernel(%arg0: i32, %arg1: i32, %arg2: i32, %arg3: memref<1x16x128xbf16, #tpu.memory_space<vmem>>, %arg4: memref<1x1x128x256xbf16, #tpu.memory_space<vmem>>, %arg5: memref<1x1x128x128xbf16, #tpu.memory_space<vmem>>, %arg6: memref<1x16x128xf32, #tpu.memory_space<vmem>>, %arg7: memref<16x128xf32, #tpu.memory_space<vmem>>) attributes {dimension_semantics = [#tpu.dimension_semantics<parallel>, #tpu.dimension_semantics<parallel>, #tpu.dimension_semantics<arbitrary>], iteration_bounds = array<i64: 4, 1, 2>, scalar_prefetch = 0 : i64, scratch_operands = 1 : i64, tpu.core_type = #tpu.core_type<tc>, window_params = [{transform_indices = @transform_0, window_bounds = array<i64: 1, 16, 128>}, {transform_indices = @transform_1, window_bounds = array<i64: 1, 1, 128, 256>}, {transform_indices = @transform_2, window_bounds = array<i64: 1, 1, 128, 128>}, {transform_indices = @transform_3, window_bounds = array<i64: 1, 16, 128>}]} {
    %c0_i32 = arith.constant 0 : i32
    %0 = arith.cmpi eq, %arg2, %c0_i32 : i32
    %1 = arith.extui %0 : i1 to i32
    %c0_i32_0 = arith.constant 0 : i32
    %2 = arith.cmpi ne, %1, %c0_i32_0 : i32
    scf.if %2 {
      %cst_18 = arith.constant 0.000000e+00 : f32
      %27 = vector.broadcast %cst_18 : f32 to vector<16x128xf32>
      %c0_19 = arith.constant 0 : index
      %c0_20 = arith.constant 0 : index
      %28 = vector.load %arg7[%c0_19, %c0_20] : memref<16x128xf32, #tpu.memory_space<vmem>>, vector<16x128xf32>
      tpu.vector_store %arg7[%c0_19, %c0_20], %27 {strides = array<i32>} : memref<16x128xf32, #tpu.memory_space<vmem>>, vector<16x128xf32>,
    } else {
    }
    %c0 = arith.constant 0 : index
    %c0_1 = arith.constant 0 : index
    %c0_2 = arith.constant 0 : index
    %3 = vector.load %arg3[%c0, %c0_1, %c0_2] : memref<1x16x128xbf16, #tpu.memory_space<vmem>>, vector<1x16x128xbf16>
    %4 = vector.shape_cast %3 : vector<1x16x128xbf16> to vector<16x128xbf16>
    %c0_3 = arith.constant 0 : index
    %c0_4 = arith.constant 0 : index
    %c0_5 = arith.constant 0 : index
    %c0_6 = arith.constant 0 : index
    %5 = vector.load %arg4[%c0_3, %c0_4, %c0_5, %c0_6] : memref<1x1x128x256xbf16, #tpu.memory_space<vmem>>, vector<1x1x128x256xbf16>
    %6 = vector.shape_cast %5 : vector<1x1x128x256xbf16> to vector<128x256xbf16>
    %cst = arith.constant dense<0.000000e+00> : vector<16x256xf32>
    %7 = tpu.matmul %4, %6, %cst {dimension_numbers = #tpu.dot_dimension_numbers<[1], [0], [0], [1], [0, 0, 1, 1], [], []>} : vector<16x128xbf16>, vector<128x256xbf16>, vector<16x256xf32> -> vector<16x256xf32>
    %8 = vector.extract_strided_slice %7 {offsets = [0, 0], sizes = [16, 128], strides = [1, 1]} : vector<16x256xf32> to vector<16x128xf32>
    %9 = vector.extract_strided_slice %7 {offsets = [0, 128], sizes = [16, 128], strides = [1, 1]} : vector<16x256xf32> to vector<16x128xf32>
    %10 = arith.negf %8 : vector<16x128xf32>
    %11 = math.exp %10 : vector<16x128xf32>
    %cst_7 = arith.constant 1.000000e+00 : f32
    %12 = vector.broadcast %cst_7 : f32 to vector<16x128xf32>
    %13 = arith.addf %12, %11 : vector<16x128xf32>
    %14 = arith.divf %12, %13 : vector<16x128xf32>
    %15 = arith.mulf %8, %14 : vector<16x128xf32>
    %16 = arith.mulf %15, %9 : vector<16x128xf32>
    %c0_8 = arith.constant 0 : index
    %c0_9 = arith.constant 0 : index
    %17 = vector.load %arg7[%c0_8, %c0_9] : memref<16x128xf32, #tpu.memory_space<vmem>>, vector<16x128xf32>
    %18 = arith.truncf %16 : vector<16x128xf32> to vector<16x128xbf16>
    %c0_10 = arith.constant 0 : index
    %c0_11 = arith.constant 0 : index
    %c0_12 = arith.constant 0 : index
    %c0_13 = arith.constant 0 : index
    %19 = vector.load %arg5[%c0_10, %c0_11, %c0_12, %c0_13] : memref<1x1x128x128xbf16, #tpu.memory_space<vmem>>, vector<1x1x128x128xbf16>
    %20 = vector.shape_cast %19 : vector<1x1x128x128xbf16> to vector<128x128xbf16>
    %cst_14 = arith.constant dense<0.000000e+00> : vector<16x128xf32>
    %21 = tpu.matmul %18, %20, %cst_14 {dimension_numbers = #tpu.dot_dimension_numbers<[1], [0], [0], [1], [0, 0, 1, 1], [], []>} : vector<16x128xbf16>, vector<128x128xbf16>, vector<16x128xf32> -> vector<16x128xf32>
    %22 = arith.addf %17, %21 : vector<16x128xf32>
    %c0_15 = arith.constant 0 : index
    %c0_16 = arith.constant 0 : index
    %23 = vector.load %arg7[%c0_15, %c0_16] : memref<16x128xf32, #tpu.memory_space<vmem>>, vector<16x128xf32>
    tpu.vector_store %arg7[%c0_15, %c0_16], %22 {strides = array<i32>} : memref<16x128xf32, #tpu.memory_space<vmem>>, vector<16x128xf32>,
    %c1_i32 = arith.constant 1 : i32
    %24 = arith.cmpi eq, %arg2, %c1_i32 : i32
    %25 = arith.extui %24 : i1 to i32
    %c0_i32_17 = arith.constant 0 : i32
    %26 = arith.cmpi ne, %25, %c0_i32_17 : i32
    scf.if %26 {
      %c0_18 = arith.constant 0 : index
      %c0_19 = arith.constant 0 : index
      %27 = vector.load %arg7[%c0_18, %c0_19] : memref<16x128xf32, #tpu.memory_space<vmem>>, vector<16x128xf32>
      %c0_20 = arith.constant 0 : index
      %c0_21 = arith.constant 0 : index
      %c0_22 = arith.constant 0 : index
      %28 = vector.load %arg6[%c0_20, %c0_21, %c0_22] : memref<1x16x128xf32, #tpu.memory_space<vmem>>, vector<1x16x128xf32>
      %29 = vector.shape_cast %28 : vector<1x16x128xf32> to vector<16x128xf32>
      %30 = vector.shape_cast %27 : vector<16x128xf32> to vector<1x16x128xf32>
      tpu.vector_store %arg6[%c0_20, %c0_21, %c0_22], %30 {strides = array<i32>} : memref<1x16x128xf32, #tpu.memory_space<vmem>>, vector<1x16x128xf32>,
    } else {
    }
    return
  }
  func.func @transform_0(%arg0: i32, %arg1: i32, %arg2: i32) -> (i32, i32, i32) {
    %c0_i32 = arith.constant 0 : i32
    %c0_i32_0 = arith.constant 0 : i32
    return %arg0, %arg1, %c0_i32 : i32, i32, i32
  }
  func.func @transform_1(%arg0: i32, %arg1: i32, %arg2: i32) -> (i32, i32, i32, i32) {
    %c0_i32 = arith.constant 0 : i32
    %c0_i32_0 = arith.constant 0 : i32
    %c0_i32_1 = arith.constant 0 : i32
    return %arg0, %arg2, %c0_i32, %c0_i32_0 : i32, i32, i32, i32
  }
  func.func @transform_2(%arg0: i32, %arg1: i32, %arg2: i32) -> (i32, i32, i32, i32) {
    %c0_i32 = arith.constant 0 : i32
    %c0_i32_0 = arith.constant 0 : i32
    %c0_i32_1 = arith.constant 0 : i32
    return %arg0, %arg2, %c0_i32, %c0_i32_0 : i32, i32, i32, i32
  }
  func.func @transform_3(%arg0: i32, %arg1: i32, %arg2: i32) -> (i32, i32, i32) {
    %c0_i32 = arith.constant 0 : i32
    %c0_i32_0 = arith.constant 0 : i32
    return %arg0, %arg1, %c0_i32 : i32, i32, i32
  }
}

</mosaic_0001>

<llo_original>
// kernel: tpu_custom_call.1
$region0: #{tpu_custom_call.1}
  #allocation0 [shape = 'u32[]', space=smem, size = 0x4, offset = 0x4, fixed_abs, tag = 'smem constant byte address 0x4 - core index']
  #allocation1 [shape = 'u32[72,128]{1,0:T(1,128)}', space=vmem, size = 0x9000, scoped, tag = 'internal scratch']
  #allocation2 [shape = 'f32[16,128]{1,0:T(8,128)}', space=vmem, size = 0x2000, scoped, tag = 'scratch operand']
  %s0 = inlined_call_operand.hbm [shape: bf16[4,16,128], index: 0, kind: input, shape index: {}]
  %s1 = inlined_call_operand.hbm [shape: bf16[4,2,128,256], index: 1, kind: input, shape index: {}]
  %s2 = inlined_call_operand.hbm [shape: bf16[4,2,128,128], index: 2, kind: input, shape index: {}]
  %s3 = inlined_call_operand.hbm [shape: f32[4,16,128], index: 3, kind: output, shape index: {}]
  %s4 = sld [smem:[#allocation0]]
  $region65: #{tpu_custom_call.1} parent=0
    _
  %s6 = ssub.s32 1, %s4
  %s7 = scalar_select 0, %s6, %s4
  $region1: #{tpu_custom_call.1} parent=0
    #allocation3 [shape = 'u8[8192]{0}', space=vmem, size = 0x2000, scoped, tag = 'input window, operand 0']
    #allocation4 [shape = 's32[2]{0}', space=sflag, size = 0x8, scoped, tag = 'scoped memory for tpu_custom_call.1']
    #allocation5 [shape = 's32[2]{0}', space=sflag, size = 0x8, scoped, tag = 'scoped memory for tpu_custom_call.1']
    #allocation6 [shape = 'u8[131072]{0}', space=vmem, size = 0x20000, scoped, tag = 'input window, operand 1']
    #allocation7 [shape = 's32[2]{0}', space=sflag, size = 0x8, scoped, tag = 'scoped memory for tpu_custom_call.1']
    #allocation8 [shape = 'u8[65536]{0}', space=vmem, size = 0x10000, scoped, tag = 'input window, operand 2']
    #allocation9 [shape = 'u8[16384]{0}', space=vmem, size = 0x4000, scoped, tag = 'output window, operand 0']
    %8 = vsyncpa [#allocation4], 0
    %s9 = scalar_lea.sflag [#allocation4], 1
    %10 = vsyncpa %s9, 0
    %11 = vsyncpa [#allocation7], 0
    %s12 = scalar_lea.sflag [#allocation7], 1
    %13 = vsyncpa %s12, 0
    %14 = vsyncpa [#allocation5], 0
    %s15 = scalar_lea.sflag [#allocation5], 1
    %16 = vsyncpa %s15, 0
    loop: start=0, step=1, limit=10
    $region2: #{tpu_custom_call.1} parent=1 // loop_pre_header
      _
    $region3: #{tpu_custom_call.1} parent=1 // loop_header
      %s18 = sphi 0, %s22
      %p19 = scmp.ge.s32.totalorder %s18, 10
      %s25 = sphi 0, %s44
      %s26 = sphi 0, %s40
      %s27 = sphi 0, %s36
      %s28 = sphi 0, %s25
      %s29 = sphi 0, %s26
      %s30 = sphi 0, %s27
      %s31 = sphi 0, %s28
      %s32 = sphi 0, %s29
      %s33 = sphi 0, %s30
      %s49 = sphi 0, %s51
      %s52 = sphi 0, %s49
      %s53 = sphi 0, %s52
      %s69 = sphi 0, %s53
      %s77 = sphi 0, %s79
      %s80 = sphi 0, %s77
      %s81 = sphi 0, %s80
      %s97 = sphi 0, %s81
      %s105 = sphi 0, %s107
      %s108 = sphi 0, %s105
      %s109 = sphi 0, %s108
      %s125 = sphi 0, %s109
      %s133 = sphi 0, %s135
      %s136 = sphi 0, %s133
      %s137 = sphi 0, %s136
      %s153 = sphi 0, %s137
    $region4: #{tpu_custom_call.1} parent=1 // loop_header_branch
      %21 = sbr.rel (%p19) target = $region8
    $region5: #{tpu_custom_call.1} parent=1 // loop_body
      %s23 = ssub.s32 %s18, 1
      %s24 = ssub.s32 %s18, 2
      %s34 = sadd.s32 1, %s27
      %p35 = scmp.ge.s32.totalorder %s34, 2
      %s36 = scalar_select %p35, 0, %s34
      %s37 = sadd.s32 1, %s26
      %s38 = scalar_select %p35, %s37, %s26
      %p39 = scmp.ge.s32.totalorder %s38, 1
      %s40 = scalar_select %p39, 0, %s38
      %s41 = sadd.s32 1, %s25
      %s42 = scalar_select %p39, %s41, %s25
      %p43 = scmp.ge.s32.totalorder %s42, 4
      %s44 = scalar_select %p43, 0, %s42
      %s45 = ssub.s32 %s25, %s44
      %s46 = ssub.s32 %s26, %s40
      %s47 = sor.u32 %s45, %s46
      %p48 = scmp.eq.s32.totalorder %s47, 0
      %s50 = sadd.s32 %s49, 1
      %s51 = scalar_select %p48, %s49, %s50
      %p54 = pneg %p48
      %p55 = scmp.eq.s32.totalorder %s18, 7
      %p56 = por %p54, %p55
      %p57 = scmp.ne.s32.totalorder %s49, %s52
      %p58 = scmp.eq.s32.totalorder %s18, 0
      %p59 = por %p57, %p58
      %p60 = scmp.ne.s32.totalorder %s49, %s52
      %p61 = scmp.eq.s32.totalorder %s23, 7
      %p62 = por %p60, %p61
      %p63 = scmp.ne.s32.totalorder %s52, %s53
      %p64 = scmp.eq.s32.totalorder %s23, 0
      %p65 = por %p63, %p64
      %p66 = scmp.ne.s32.totalorder %s52, %s53
      %p67 = scmp.eq.s32.totalorder %s24, 7
      %p68 = por %p66, %p67
      %p70 = scmp.ne.s32.totalorder %s53, %s69
      %p71 = scmp.eq.s32.totalorder %s24, 0
      %p72 = por %p70, %p71
      %s73 = ssub.s32 %s25, %s44
      %s74 = ssub.s32 %s27, %s36
      %s75 = sor.u32 %s73, %s74
      %p76 = scmp.eq.s32.totalorder %s75, 0
      %s78 = sadd.s32 %s77, 1
      %s79 = scalar_select %p76, %s77, %s78
      %p82 = pneg %p76
      %p83 = scmp.eq.s32.totalorder %s18, 7
      %p84 = por %p82, %p83
      %p85 = scmp.ne.s32.totalorder %s77, %s80
      %p86 = scmp.eq.s32.totalorder %s18, 0
      %p87 = por %p85, %p86
      %p88 = scmp.ne.s32.totalorder %s77, %s80
      %p89 = scmp.eq.s32.totalorder %s23, 7
      %p90 = por %p88, %p89
      %p91 = scmp.ne.s32.totalorder %s80, %s81
      %p92 = scmp.eq.s32.totalorder %s23, 0
      %p93 = por %p91, %p92
      %p94 = scmp.ne.s32.totalorder %s80, %s81
      %p95 = scmp.eq.s32.totalorder %s24, 7
      %p96 = por %p94, %p95
      %p98 = scmp.ne.s32.totalorder %s81, %s97
      %p99 = scmp.eq.s32.totalorder %s24, 0
      %p100 = por %p98, %p99
      %s101 = ssub.s32 %s25, %s44
      %s102 = ssub.s32 %s27, %s36
      %s103 = sor.u32 %s101, %s102
      %p104 = scmp.eq.s32.totalorder %s103, 0
      %s106 = sadd.s32 %s105, 1
      %s107 = scalar_select %p104, %s105, %s106
      %p110 = pneg %p104
      %p111 = scmp.eq.s32.totalorder %s18, 7
      %p112 = por %p110, %p111
      %p113 = scmp.ne.s32.totalorder %s105, %s108
      %p114 = scmp.eq.s32.totalorder %s18, 0
      %p115 = por %p113, %p114
      %p116 = scmp.ne.s32.totalorder %s105, %s108
      %p117 = scmp.eq.s32.totalorder %s23, 7
      %p118 = por %p116, %p117
      %p119 = scmp.ne.s32.totalorder %s108, %s109
      %p120 = scmp.eq.s32.totalorder %s23, 0
      %p121 = por %p119, %p120
      %p122 = scmp.ne.s32.totalorder %s108, %s109
      %p123 = scmp.eq.s32.totalorder %s24, 7
      %p124 = por %p122, %p123
      %p126 = scmp.ne.s32.totalorder %s109, %s125
      %p127 = scmp.eq.s32.totalorder %s24, 0
      %p128 = por %p126, %p127
      %s129 = ssub.s32 %s25, %s44
      %s130 = ssub.s32 %s26, %s40
      %s131 = sor.u32 %s129, %s130
      %p132 = scmp.eq.s32.totalorder %s131, 0
      %s134 = sadd.s32 %s133, 1
      %s135 = scalar_select %p132, %s133, %s134
      %p138 = pneg %p132
      %p139 = scmp.eq.s32.totalorder %s18, 7
      %p140 = por %p138, %p139
      %p141 = scmp.ne.s32.totalorder %s133, %s136
      %p142 = scmp.eq.s32.totalorder %s18, 0
      %p143 = por %p141, %p142
      %p144 = scmp.ne.s32.totalorder %s133, %s136
      %p145 = scmp.eq.s32.totalorder %s23, 7
      %p146 = por %p144, %p145
      %p147 = scmp.ne.s32.totalorder %s136, %s137
      %p148 = scmp.eq.s32.totalorder %s23, 0
      %p149 = por %p147, %p148
      %p150 = scmp.ne.s32.totalorder %s136, %s137
      %p151 = scmp.eq.s32.totalorder %s24, 7
      %p152 = por %p150, %p151
      %p154 = scmp.ne.s32.totalorder %s137, %s153
      %p155 = scmp.eq.s32.totalorder %s24, 0
      %p156 = por %p154, %p155
      %p157 = scmp.le.s32.totalorder 1, %s18
      %p158 = scmp.lt.s32.totalorder %s18, 9
      %p159 = pnand %p157, %p158
      %p160 = pneg %p159
      // Predicated region
      $region9: #{tpu_custom_call.1} parent=5 // pred_check
        _
      $region10: #{tpu_custom_call.1} parent=5 // pred_check_branch
        %162 = sbr.rel (%p159) target = $region12
      $region11: #{tpu_custom_call.1} parent=5 // pred_region
        %s163 = ssub.s32 %s18, 1
      $region12: #{tpu_custom_call.1} parent=5 // pred_fallthru
        _
      %p164 = scmp.lt.s32.totalorder %s18, 8
      // Predicated region
      $region13: #{tpu_custom_call.1} parent=5 // pred_check
        %p165 = pneg %p164
      $region14: #{tpu_custom_call.1} parent=5 // pred_check_branch
        %167 = sbr.rel (%p165) target = $region16
      $region15: #{tpu_custom_call.1} parent=5 // pred_region
        // Predicated region
        $region17: #{tpu_custom_call.1} parent=15 // pred_check
          %p168 = pneg %p59
        $region18: #{tpu_custom_call.1} parent=15 // pred_check_branch
          %170 = sbr.rel (%p168) target = $region20
        $region19: #{tpu_custom_call.1} parent=15 // pred_region
          %s171 = sand.u32 %s49, 1
          %s172 = scalar_lea.sflag [#allocation4], %s171
          %s173 = sand.u32 %s49, 1
          %s174 = smul.addr %s173, 8
          %s175 = scalar_lea.vmem [#allocation3], %s174
          %s176 = smul.u32 2, %s26
          %178 = vsyncadd %s172, 0
          %s179 = smul.addr %s25, 2
          %s180 = sadd.s32 %s176, %s179
          %s181 = smul.addr %s180, 4
          %s182 = scalar_lea.hbm %s0, %s181
          %s183 = sshll.u32 %s182, 4
          %s184 = int_to_ptr.hbm [resolvable:$true] %s183
          %s185 = sshll.u32 %s175, 4
          %s186 = int_to_ptr.vmem [resolvable:$true] %s185
          %191 = dma.hbm_to_vmem [thread:$0]  %s184, 128, %s186, %s172, 64, 64, 4
        $region20: #{tpu_custom_call.1} parent=15 // pred_fallthru
          _
        // Predicated region
        $region21: #{tpu_custom_call.1} parent=15 // pred_check
          %p192 = pneg %p87
        $region22: #{tpu_custom_call.1} parent=15 // pred_check_branch
          %194 = sbr.rel (%p192) target = $region24
        $region23: #{tpu_custom_call.1} parent=15 // pred_region
          %s195 = sand.u32 %s18, 1
          %s196 = scalar_lea.sflag [#allocation7], %s195
          %s197 = sand.u32 %s77, 1
          %s198 = smul.addr %s197, 128
          %s199 = scalar_lea.vmem [#allocation6], %s198
          %201 = vsyncadd %s196, 0
          %s202 = smul.addr %s27, 32
          %s203 = smul.addr %s25, 64
          %s204 = sadd.s32 %s202, %s203
          %s205 = smul.addr %s204, 4
          %s206 = scalar_lea.hbm %s1, %s205
          %s207 = sshll.u32 %s206, 4
          %s208 = int_to_ptr.hbm [resolvable:$true] %s207
          %s209 = sshll.u32 %s199, 4
          %s210 = int_to_ptr.vmem [resolvable:$true] %s209
          %215 = dma.hbm_to_vmem [thread:$0]  %s208, 2048, %s210, %s196, 128, 128, 8
        $region24: #{tpu_custom_call.1} parent=15 // pred_fallthru
          _
        // Predicated region
        $region25: #{tpu_custom_call.1} parent=15 // pred_check
          %p216 = pneg %p115
        $region26: #{tpu_custom_call.1} parent=15 // pred_check_branch
          %218 = sbr.rel (%p216) target = $region28
        $region27: #{tpu_custom_call.1} parent=15 // pred_region
          %s219 = sand.u32 %s18, 1
          %s220 = scalar_lea.sflag [#allocation7], %s219
          %s221 = sand.u32 %s105, 1
          %s222 = smul.addr %s221, 64
          %s223 = scalar_lea.vmem [#allocation8], %s222
          %225 = vsyncadd %s220, 0
          %s226 = smul.addr %s27, 16
          %s227 = smul.addr %s25, 32
          %s228 = sadd.s32 %s226, %s227
          %s229 = smul.addr %s228, 4
          %s230 = scalar_lea.hbm %s2, %s229
          %s231 = sshll.u32 %s230, 4
          %s232 = int_to_ptr.hbm [resolvable:$true] %s231
          %s233 = sshll.u32 %s223, 4
          %s234 = int_to_ptr.vmem [resolvable:$true] %s233
          %239 = dma.hbm_to_vmem [thread:$0]  %s232, 1024, %s234, %s220, 64, 64, 4
        $region28: #{tpu_custom_call.1} parent=15 // pred_fallthru
          _
      $region16: #{tpu_custom_call.1} parent=5 // pred_fallthru
        _
      %p240 = scmp.le.s32.totalorder 1, %s18
      %p241 = scmp.lt.s32.totalorder %s18, 9
      %p242 = pnand %p240, %p241
      %p243 = pneg %p242
      // Predicated region
      $region29: #{tpu_custom_call.1} parent=5 // pred_check
        _
      $region30: #{tpu_custom_call.1} parent=5 // pred_check_branch
        %245 = sbr.rel (%p242) target = $region32
      $region31: #{tpu_custom_call.1} parent=5 // pred_region
        %s246 = ssub.s32 %s18, 1
        %s247 = sand.u32 %s52, 1
        %s248 = scalar_lea.sflag [#allocation4], %s247
        %s249 = sand.u32 %s52, 1
        %s250 = smul.addr %s249, 8
        %s251 = scalar_lea.vmem [#allocation3], %s250
        // Predicated region
        $region33: #{tpu_custom_call.1} parent=31 // pred_check
          %p252 = pneg %p65
        $region34: #{tpu_custom_call.1} parent=31 // pred_check_branch
          %254 = sbr.rel (%p252) target = $region36
        $region35: #{tpu_custom_call.1} parent=31 // pred_region
          %256 = dma.done %s248, 128
        $region36: #{tpu_custom_call.1} parent=31 // pred_fallthru
          _
        %s257 = sand.u32 %s23, 1
        %s258 = scalar_lea.sflag [#allocation7], %s257
        %s259 = sand.u32 %s80, 1
        %s260 = smul.addr %s259, 128
        %s261 = scalar_lea.vmem [#allocation6], %s260
        // Predicated region
        $region37: #{tpu_custom_call.1} parent=31 // pred_check
          %p262 = pneg %p93
        $region38: #{tpu_custom_call.1} parent=31 // pred_check_branch
          %264 = sbr.rel (%p262) target = $region40
        $region39: #{tpu_custom_call.1} parent=31 // pred_region
          %266 = dma.done %s258, 2048
        $region40: #{tpu_custom_call.1} parent=31 // pred_fallthru
          _
        %s267 = sand.u32 %s23, 1
        %s268 = scalar_lea.sflag [#allocation7], %s267
        %s269 = sand.u32 %s108, 1
        %s270 = smul.addr %s269, 64
        %s271 = scalar_lea.vmem [#allocation8], %s270
        // Predicated region
        $region41: #{tpu_custom_call.1} parent=31 // pred_check
          %p272 = pneg %p121
        $region42: #{tpu_custom_call.1} parent=31 // pred_check_branch
          %274 = sbr.rel (%p272) target = $region44
        $region43: #{tpu_custom_call.1} parent=31 // pred_region
          %276 = dma.done %s268, 1024
        $region44: #{tpu_custom_call.1} parent=31 // pred_fallthru
          _
        %s277 = sand.u32 %s52, 1
        %s278 = scalar_lea.sflag [#allocation4], %s277
        %s279 = sand.u32 %s52, 1
        %s280 = smul.addr %s279, 8
        %s281 = scalar_lea.vmem [#allocation3], %s280
        %p282 = pneg %p65
        %p283 = pneg %p62
        %s284 = sand.u32 %s23, 1
        %s285 = scalar_lea.sflag [#allocation7], %s284
        %s286 = sand.u32 %s80, 1
        %s287 = smul.addr %s286, 128
        %s288 = scalar_lea.vmem [#allocation6], %s287
        %p289 = pneg %p93
        %p290 = pneg %p90
        %s291 = sand.u32 %s23, 1
        %s292 = scalar_lea.sflag [#allocation7], %s291
        %s293 = sand.u32 %s108, 1
        %s294 = smul.addr %s293, 64
        %s295 = scalar_lea.vmem [#allocation8], %s294
        %p296 = pneg %p121
        %p297 = pneg %p118
        %p298 = pneg %p149
        %p299 = pneg %p146
        %s300 = sand.u32 %s136, 1
        %s301 = scalar_lea.sflag [#allocation5], %s300
        %s302 = sand.u32 %s136, 1
        %s303 = smul.addr %s302, 16
        %s304 = scalar_lea.vmem [#allocation9], %s303
        %s305 = smul.u32 2, %s29
        %s306 = smul.u32 2, %s29
        %p307 = scmp.eq.s32.totalorder %s30, 0
        // Predicated region
        $region45: #{tpu_custom_call.1} parent=31 // pred_check
          %p308 = pneg %p307
        $region46: #{tpu_custom_call.1} parent=31 // pred_check_branch
          %310 = sbr.rel (%p308) target = $region48
        $region47: #{tpu_custom_call.1} parent=31 // pred_region
          %311 = vst [vmem:[#allocation2] sm:$0xff] 0.0
          %312 = vst [vmem:[#allocation2 + $0x8] sm:$0xff] 0.0
        $region48: #{tpu_custom_call.1} parent=31 // pred_fallthru
          _
        %v313 = vld [vmem:[%s251] sm:$0xf]
        %v314 = vld [vmem:[%s251 + $0x4] sm:$0xf]
        %v315 = vld [vmem:[%s261] sm:$0xff]
        %v316 = vld [vmem:[%s261 + $0x8] sm:$0xff]
        %v317 = vld [vmem:[%s261 + $0x10] sm:$0xff]
        %v318 = vld [vmem:[%s261 + $0x18] sm:$0xff]
        %v319 = vld [vmem:[%s261 + $0x20] sm:$0xff]
        %v320 = vld [vmem:[%s261 + $0x28] sm:$0xff]
        %v321 = vld [vmem:[%s261 + $0x30] sm:$0xff]
        %v322 = vld [vmem:[%s261 + $0x38] sm:$0xff]
        %v323 = vld [vmem:[%s261 + $0x40] sm:$0xff]
        %v324 = vld [vmem:[%s261 + $0x48] sm:$0xff]
        %v325 = vld [vmem:[%s261 + $0x50] sm:$0xff]
        %v326 = vld [vmem:[%s261 + $0x58] sm:$0xff]
        %v327 = vld [vmem:[%s261 + $0x60] sm:$0xff]
        %v328 = vld [vmem:[%s261 + $0x68] sm:$0xff]
        %v329 = vld [vmem:[%s261 + $0x70] sm:$0xff]
        %v330 = vld [vmem:[%s261 + $0x78] sm:$0xff]
        %v333 = vunpack.c.l.b16 %v313
        %v334 = vunpack.c.l.b16 %v314
        %v335 = vpack.c.b16 %v334, %v333
        %v353 = vunpack.c.l.b16 %v315
        %v354 = vunpack.c.h.b16 %v315
        %v355 = vunpack.c.l.b16 %v316
        %v356 = vunpack.c.h.b16 %v316
        %v357 = vunpack.c.l.b16 %v317
        %v358 = vunpack.c.h.b16 %v317
        %v359 = vunpack.c.l.b16 %v318
        %v360 = vunpack.c.h.b16 %v318
        %v361 = vunpack.c.l.b16 %v319
        %v362 = vunpack.c.h.b16 %v319
        %v363 = vunpack.c.l.b16 %v320
        %v364 = vunpack.c.h.b16 %v320
        %v365 = vunpack.c.l.b16 %v321
        %v366 = vunpack.c.h.b16 %v321
        %v367 = vunpack.c.l.b16 %v322
        %v368 = vunpack.c.h.b16 %v322
        %v369 = vunpack.c.l.b16 %v323
        %v370 = vunpack.c.h.b16 %v323
        %v371 = vunpack.c.l.b16 %v324
        %v372 = vunpack.c.h.b16 %v324
        %v373 = vunpack.c.l.b16 %v325
        %v374 = vunpack.c.h.b16 %v325
        %v375 = vunpack.c.l.b16 %v326
        %v376 = vunpack.c.h.b16 %v326
        %v377 = vunpack.c.l.b16 %v327
        %v378 = vunpack.c.h.b16 %v327
        %v379 = vunpack.c.l.b16 %v328
        %v380 = vunpack.c.h.b16 %v328
        %v381 = vunpack.c.l.b16 %v329
        %v382 = vunpack.c.h.b16 %v329
        %v383 = vunpack.c.l.b16 %v330
        %v384 = vunpack.c.h.b16 %v330
        %v385 = vpack.c.b16 %v355, %v353
        %v386 = vpack.c.b16 %v356, %v354
        %v387 = vpack.c.b16 %v359, %v357
        %v388 = vpack.c.b16 %v360, %v358
        %v389 = vpack.c.b16 %v363, %v361
        %v390 = vpack.c.b16 %v364, %v362
        %v391 = vpack.c.b16 %v367, %v365
        %v392 = vpack.c.b16 %v368, %v366
        %v393 = vpack.c.b16 %v371, %v369
        %v394 = vpack.c.b16 %v372, %v370
        %v395 = vpack.c.b16 %v375, %v373
        %v396 = vpack.c.b16 %v376, %v374
        %v397 = vpack.c.b16 %v379, %v377
        %v398 = vpack.c.b16 %v380, %v378
        %v399 = vpack.c.b16 %v383, %v381
        %v400 = vpack.c.b16 %v384, %v382
        %417 = vmatpush.bf16.msra.mxu0 %v399
        %418 = vmatpush.bf16.msra.mxu0 %v397
        %419 = vmatpush.bf16.msra.mxu0 %v395
        %420 = vmatpush.bf16.msra.mxu0 %v393
        %421 = vmatpush.bf16.msra.mxu0 %v391
        %422 = vmatpush.bf16.msra.mxu0 %v389
        %423 = vmatpush.bf16.msra.mxu0 %v387
        %424 = vmatpush.bf16.msra.mxu0 %v385
        %425 = vmatmul.bf16.gmra.mxu0 %v335
        %v426 = vpop.f32.mrf.mxu0
        %v427 = vadd.f32 0.0, %v426
        %v428 = vpop.f32.mrf.mxu0
        %v429 = vadd.f32 0.0, %v428
        %430 = vdwg.mxu0
        %431 = vmatpush.bf16.msra.mxu0 %v400
        %432 = vmatpush.bf16.msra.mxu0 %v398
        %433 = vmatpush.bf16.msra.mxu0 %v396
        %434 = vmatpush.bf16.msra.mxu0 %v394
        %435 = vmatpush.bf16.msra.mxu0 %v392
        %436 = vmatpush.bf16.msra.mxu0 %v390
        %437 = vmatpush.bf16.msra.mxu0 %v388
        %438 = vmatpush.bf16.msra.mxu0 %v386
        %439 = vmatmul.bf16.gmra.mxu0 %v335
        %v440 = vpop.f32.mrf.mxu0
        %v441 = vadd.f32 0.0, %v440
        %v442 = vpop.f32.mrf.mxu0
        %v443 = vadd.f32 0.0, %v442
        %444 = vdwg.mxu0
        %v445 = vxor.u32 %v427, 2147483648
        %v446 = vxor.u32 %v429, 2147483648
        %v447 = vmul.f32 %v445, 1.442695
        %v448 = vpow.pop %v447
        %v449 = vmul.f32 %v446, 1.442695
        %v450 = vpow.pop %v449
        %v451 = vadd.f32 %v448, 1.0
        %v452 = vadd.f32 %v450, 1.0
        %v453 = vrcp.pop %v451
        %v454 = vmul.f32 %v451, %v453
        %v455 = vsub.f32 1.0, %v454
        %v456 = vmul.f32 %v453, %v455
        %v457 = vadd.f32 %v453, %v456
        %vm458 = vweird.f32 %v451
        %vm459 = vweird.f32 %v453
        %vm460 = vmor %vm458, %vm459
        %v461 = vsel %vm460, %v453, %v457
        %v462 = vand.u32 2147483647, %v451
        %vm463 = vcmp.eq.f32.partialorder %v462, 8.507059e+37
        %v464 = vand.u32 %v451, 2147483648
        %v465 = vor.u32 1.1754944e-38, %v464
        %v466 = vsel %vm463, %v465, %v461
        %v467 = vmul.f32 1.0, %v466
        %v468 = vrcp.pop %v452
        %v469 = vmul.f32 %v452, %v468
        %v470 = vsub.f32 1.0, %v469
        %v471 = vmul.f32 %v468, %v470
        %v472 = vadd.f32 %v468, %v471
        %vm473 = vweird.f32 %v452
        %vm474 = vweird.f32 %v468
        %vm475 = vmor %vm473, %vm474
        %v476 = vsel %vm475, %v468, %v472
        %v477 = vand.u32 2147483647, %v452
        %vm478 = vcmp.eq.f32.partialorder %v477, 8.507059e+37
        %v479 = vand.u32 %v452, 2147483648
        %v480 = vor.u32 1.1754944e-38, %v479
        %v481 = vsel %vm478, %v480, %v476
        %v482 = vmul.f32 1.0, %v481
        %v483 = vmul.f32 %v427, %v467
        %v484 = vmul.f32 %v429, %v482
        %v485 = vmul.f32 %v483, %v441
        %v486 = vmul.f32 %v484, %v443
        %v487 = vld [vmem:[#allocation2] sm:$0xff]
        %v488 = vld [vmem:[#allocation2 + $0x8] sm:$0xff]
        %v489 = vpack.c.bf16 %v486, %v485
        %v490 = vld [vmem:[%s271] sm:$0xf]
        %v491 = vld [vmem:[%s271 + $0x4] sm:$0xf]
        %v492 = vld [vmem:[%s271 + $0x8] sm:$0xf]
        %v493 = vld [vmem:[%s271 + $0xc] sm:$0xf]
        %v494 = vld [vmem:[%s271 + $0x10] sm:$0xf]
        %v495 = vld [vmem:[%s271 + $0x14] sm:$0xf]
        %v496 = vld [vmem:[%s271 + $0x18] sm:$0xf]
        %v497 = vld [vmem:[%s271 + $0x1c] sm:$0xf]
        %v498 = vld [vmem:[%s271 + $0x20] sm:$0xf]
        %v499 = vld [vmem:[%s271 + $0x24] sm:$0xf]
        %v500 = vld [vmem:[%s271 + $0x28] sm:$0xf]
        %v501 = vld [vmem:[%s271 + $0x2c] sm:$0xf]
        %v502 = vld [vmem:[%s271 + $0x30] sm:$0xf]
        %v503 = vld [vmem:[%s271 + $0x34] sm:$0xf]
        %v504 = vld [vmem:[%s271 + $0x38] sm:$0xf]
        %v505 = vld [vmem:[%s271 + $0x3c] sm:$0xf]
        %v522 = vunpack.c.l.b16 %v490
        %v523 = vunpack.c.l.b16 %v491
        %v524 = vunpack.c.l.b16 %v492
        %v525 = vunpack.c.l.b16 %v493
        %v526 = vunpack.c.l.b16 %v494
        %v527 = vunpack.c.l.b16 %v495
        %v528 = vunpack.c.l.b16 %v496
        %v529 = vunpack.c.l.b16 %v497
        %v530 = vunpack.c.l.b16 %v498
        %v531 = vunpack.c.l.b16 %v499
        %v532 = vunpack.c.l.b16 %v500
        %v533 = vunpack.c.l.b16 %v501
        %v534 = vunpack.c.l.b16 %v502
        %v535 = vunpack.c.l.b16 %v503
        %v536 = vunpack.c.l.b16 %v504
        %v537 = vunpack.c.l.b16 %v505
        %v538 = vpack.c.b16 %v523, %v522
        %v539 = vpack.c.b16 %v525, %v524
        %v540 = vpack.c.b16 %v527, %v526
        %v541 = vpack.c.b16 %v529, %v528
        %v542 = vpack.c.b16 %v531, %v530
        %v543 = vpack.c.b16 %v533, %v532
        %v544 = vpack.c.b16 %v535, %v534
        %v545 = vpack.c.b16 %v537, %v536
        %554 = vmatpush.bf16.msra.mxu0 %v545
        %555 = vmatpush.bf16.msra.mxu0 %v544
        %556 = vmatpush.bf16.msra.mxu0 %v543
        %557 = vmatpush.bf16.msra.mxu0 %v542
        %558 = vmatpush.bf16.msra.mxu0 %v541
        %559 = vmatpush.bf16.msra.mxu0 %v540
        %560 = vmatpush.bf16.msra.mxu0 %v539
        %561 = vmatpush.bf16.msra.mxu0 %v538
        %562 = vmatmul.bf16.gmra.mxu0 %v489
        %v563 = vpop.f32.mrf.mxu0
        %v564 = vadd.f32 0.0, %v563
        %v565 = vpop.f32.mrf.mxu0
        %v566 = vadd.f32 0.0, %v565
        %567 = vdwg.mxu0
        %v568 = vadd.f32 %v487, %v564
        %v569 = vadd.f32 %v488, %v566
        %570 = vst [vmem:[#allocation2] sm:$0xff] %v568
        %571 = vst [vmem:[#allocation2 + $0x8] sm:$0xff] %v569
        %p572 = scmp.eq.s32.totalorder %s30, 1
        // Predicated region
        $region49: #{tpu_custom_call.1} parent=31 // pred_check
          %p573 = pneg %p572
        $region50: #{tpu_custom_call.1} parent=31 // pred_check_branch
          %575 = sbr.rel (%p573) target = $region52
        $region51: #{tpu_custom_call.1} parent=31 // pred_region
          %v576 = vld [vmem:[#allocation2] sm:$0xff]
          %v577 = vld [vmem:[#allocation2 + $0x8] sm:$0xff]
          %578 = vst [vmem:[%s304] sm:$0xff] %v576
          %579 = vst [vmem:[%s304 + $0x8] sm:$0xff] %v577
        $region52: #{tpu_custom_call.1} parent=31 // pred_fallthru
          _
        %s580 = sand.u32 %s136, 1
        %s581 = scalar_lea.sflag [#allocation5], %s580
        %s582 = sand.u32 %s136, 1
        %s583 = smul.addr %s582, 16
        %s584 = scalar_lea.vmem [#allocation9], %s583
        // Predicated region
        $region53: #{tpu_custom_call.1} parent=31 // pred_check
          %p585 = pneg %p146
        $region54: #{tpu_custom_call.1} parent=31 // pred_check_branch
          %587 = sbr.rel (%p585) target = $region56
        $region55: #{tpu_custom_call.1} parent=31 // pred_region
          %s588 = smul.u32 2, %s29
          %590 = vsyncadd %s581, 0
          %s591 = smul.addr %s28, 2
          %s592 = sadd.s32 %s588, %s591
          %s593 = smul.addr %s592, 8
          %s594 = scalar_lea.hbm %s3, %s593
          %s595 = sshll.u32 %s584, 4
          %s596 = int_to_ptr.vmem [resolvable:$true] %s595
          %s597 = sshll.u32 %s594, 4
          %s598 = int_to_ptr.hbm [resolvable:$true] %s597
          %603 = dma.vmem_to_hbm [thread:$0]  %s596, 256, %s598, %s581, 128, 128, 8
        $region56: #{tpu_custom_call.1} parent=31 // pred_fallthru
          _
      $region32: #{tpu_custom_call.1} parent=5 // pred_fallthru
        _
      %p604 = scmp.le.s32.totalorder 2, %s18
      // Predicated region
      $region57: #{tpu_custom_call.1} parent=5 // pred_check
        %p605 = pneg %p604
      $region58: #{tpu_custom_call.1} parent=5 // pred_check_branch
        %607 = sbr.rel (%p605) target = $region60
      $region59: #{tpu_custom_call.1} parent=5 // pred_region
        %s608 = ssub.s32 %s18, 2
        // Predicated region
        $region61: #{tpu_custom_call.1} parent=59 // pred_check
          %p609 = pneg %p152
        $region62: #{tpu_custom_call.1} parent=59 // pred_check_branch
          %611 = sbr.rel (%p609) target = $region64
        $region63: #{tpu_custom_call.1} parent=59 // pred_region
          %s612 = sand.u32 %s137, 1
          %s613 = scalar_lea.sflag [#allocation5], %s612
          %s614 = sand.u32 %s137, 1
          %s615 = smul.addr %s614, 16
          %s616 = scalar_lea.vmem [#allocation9], %s615
          %618 = dma.done %s613, 256
        $region64: #{tpu_custom_call.1} parent=59 // pred_fallthru
          _
      $region60: #{tpu_custom_call.1} parent=5 // pred_fallthru
        _
    $region6: #{tpu_custom_call.1} parent=1 // loop_footer
      %s22 = sadd.s32 1, %s18
    $region7: #{tpu_custom_call.1} parent=1 // loop_footer_branch
      %17 = sbr.rel target = $region3
    $region8: #{tpu_custom_call.1} parent=1 // loop_exit
      _
    %619 = vsyncpa [#allocation4], 1
    %s620 = scalar_lea.sflag [#allocation4], 1
    %621 = vsyncpa %s620, 1
    %622 = vsyncpa [#allocation7], 1
    %s623 = scalar_lea.sflag [#allocation7], 1
    %624 = vsyncpa %s623, 1
    %625 = vsyncpa [#allocation5], 1
    %s626 = scalar_lea.sflag [#allocation5], 1
    %627 = vsyncpa %s626, 1

</llo_original>
